<compile_context>
chip_gen: v7x
topology: tpu7x:2x2x1
jax: 0.10.0
libtpu: 0.0.40
codegen_flags: <defaults>
</compile_context>

<pallas_src>
import jax
import jax.numpy as jnp
from jax.experimental import pallas as pl
from jax.experimental.pallas import tpu as pltpu


def _upsample_kernel(xm_ref, xh_ref, w_ref, b_ref, o_ref):
    # xm_ref: (1, TH, W+1, Cin)   input rows [i*TH, i*TH+TH)  (right zero halo col)
    # xh_ref: (1, 1,  W+1, Cin)   halo row i*TH+TH            (bottom zero halo row)
    # w_ref : (4*Cin, 4*Cout)     folded sub-pixel weight  [tap*Cin, parity*Cout]
    # b_ref : (1, 4*Cout)         bias tiled over the 4 parities
    # o_ref : (1, TH, W, 4*Cout)  parity-major output
    _, TH, W, PC = o_ref.shape
    Cin = xm_ref.shape[-1]

    xm = xm_ref[0]                                   # (TH, W+1, Cin)
    xh = xh_ref[0]                                   # (1,  W+1, Cin)
    if TH > 1:
        xn = jnp.concatenate([xm[1:], xh], axis=0)   # rows shifted down by 1
    else:
        xn = xh

    # 2x2 window taps for every input pixel (t00=x[i,j], t01=x[i,j+1],
    # t10=x[i+1,j], t11=x[i+1,j+1]) folded into the contraction dim.
    t00 = xm[:, :W, :]
    t01 = xm[:, 1:W + 1, :]
    t10 = xn[:, :W, :]
    t11 = xn[:, 1:W + 1, :]
    patches = jnp.concatenate([t00, t01, t10, t11], axis=-1)   # (TH, W, 4*Cin)
    patches = patches.reshape(TH * W, 4 * Cin)

    # single MXU push: all 4 parity planes at once, f32 accumulation
    acc = jnp.dot(patches, w_ref[...], preferred_element_type=jnp.float32)
    acc = acc + b_ref[...]                       # bias
    acc = jnp.where(acc >= 0, acc, 0.01 * acc)   # LeakyReLU(0.01)

    o_ref[...] = acc.reshape(1, TH, W, PC).astype(o_ref.dtype)


def _pick_row_tile(H):
    """Largest power-of-two row tile <= 64 dividing H with >= 2 tiles."""
    for th in (64, 32, 16, 8, 4, 2):
        if H % th == 0 and H // th >= 2:
            return th
    return H


def upsampling_forward(x_nchw, weight, bias):
    """ConvTranspose2d(k=3, s=2, p=1, op=1) + LeakyReLU, matching PyTorch.

    x_nchw : (N, Cin, H, W)
    weight : (Cin, Cout, 3, 3)   -- PyTorch ConvTranspose2d weight layout
    bias   : (Cout,)
    returns: (N, Cout, 2H, 2W)
    """
    N, Cin, H, W = x_nchw.shape
    Cout = weight.shape[1]

    # NCHW -> NHWC, plus a single zero halo row/col (bottom/right) for the
    # x[i+1], x[j+1] taps of the sub-pixel decomposition.
    x = jnp.transpose(x_nchw, (0, 2, 3, 1))
    xp = jnp.pad(x, ((0, 0), (0, 1), (0, 1), (0, 0)))
    Wp = W + 1

    # Folded weight: out[2i+ph, 2j+pw] = sum_{kh,kw} x[ih,iw] . W[kh,kw]
    # with 2*ih+kh = 2i+ph+1, 2*iw+kw = 2j+pw+1  (stride 2, pad 1).
    Wk = jnp.transpose(weight, (2, 3, 0, 1))          # (kh, kw, Cin, Cout)
    z = jnp.zeros((Cin, Cout), weight.dtype)
    # rows: parity p = 2*ph + pw ; cols: tap t (0:x[i,j] 1:x[i,j+1] 2:x[i+1,j] 3:x[i+1,j+1])
    taps_per_parity = [
        [Wk[1, 1], z,        z,        z       ],     # (even, even)
        [Wk[1, 2], Wk[1, 0], z,        z       ],     # (even, odd )
        [Wk[2, 1], z,        Wk[0, 1], z       ],     # (odd , even)
        [Wk[2, 2], Wk[2, 0], Wk[0, 2], Wk[0, 0]],     # (odd , odd )
    ]
    w_big = jnp.stack([jnp.stack(r, axis=0) for r in taps_per_parity], axis=0)
    # (p, t, Cin, Cout) -> (t, Cin, p, Cout) -> (4*Cin, 4*Cout)
    w_big = jnp.transpose(w_big, (1, 2, 0, 3)).reshape(4 * Cin, 4 * Cout)
    b_big = jnp.tile(bias, 4).reshape(1, 4 * Cout)

    TH = _pick_row_tile(H)
    grid = (N, H // TH)

    out_raw = pl.pallas_call(
        _upsample_kernel,
        out_shape=jax.ShapeDtypeStruct((N, H, W, 4 * Cout), x.dtype),
        grid=grid,
        in_specs=[
            # main row tile
            pl.BlockSpec((1, TH, Wp, Cin), lambda n, i: (n, i, 0, 0)),
            # 1-row halo (row i*TH + TH; the last tile reads the zero pad row)
            pl.BlockSpec((1, 1, Wp, Cin), lambda n, i: (n, (i + 1) * TH, 0, 0)),
            pl.BlockSpec((4 * Cin, 4 * Cout), lambda n, i: (0, 0)),
            pl.BlockSpec((1, 4 * Cout), lambda n, i: (0, 0)),
        ],
        out_specs=pl.BlockSpec((1, TH, W, 4 * Cout), lambda n, i: (n, i, 0, 0)),
        compiler_params=pltpu.CompilerParams(
            dimension_semantics=("parallel", "parallel"),
            vmem_limit_bytes=32 * 1024 * 1024),
    )(xp, xp, w_big, b_big)

    # pixel shuffle: (N, H, W, 2, 2, Cout) -> (N, Cout, 2H, 2W)
    out = out_raw.reshape(N, H, W, 2, 2, Cout)
    out = jnp.transpose(out, (0, 5, 1, 3, 2, 4))
    return out.reshape(N, Cout, 2 * H, 2 * W)


def _reference(x_nchw, weight, bias):
    """Pure-JAX/XLA reference for the same transposed conv + LeakyReLU."""
    w_conv = jnp.transpose(weight[:, :, ::-1, ::-1], (1, 0, 2, 3))  # OIHW
    y = jax.lax.conv_general_dilated(
        x_nchw, w_conv, window_strides=(1, 1),
        padding=((1, 2), (1, 2)), lhs_dilation=(2, 2),
        dimension_numbers=("NCHW", "OIHW", "NCHW"))
    y = y + bias.reshape(1, -1, 1, 1)
    return jnp.where(y >= 0, y, 0.01 * y)


if __name__ == "__main__":
    N, Cin, Cout, H, W = 2, 4, 8, 16, 16

    key = jax.random.PRNGKey(0)
    kx, kw, kb = jax.random.split(key, 3)

    x = jax.random.normal(kx, (N, Cin, H, W), jnp.float32)

    # deterministic synthetic parameter init (PyTorch-like uniform bound)
    bound = 1.0 / (Cin * 3 * 3) ** 0.5
    weight = jax.random.uniform(kw, (Cin, Cout, 3, 3), jnp.float32,
                                minval=-bound, maxval=bound)
    bias = jax.random.uniform(kb, (Cout,), jnp.float32,
                              minval=-bound, maxval=bound)

    fwd = jax.jit(upsampling_forward)
    out = jax.block_until_ready(fwd(x, weight, bias))
    assert out.shape == (N, Cout, 2 * H, 2 * W), out.shape

    ref = jax.block_until_ready(_reference(x, weight, bias))
    assert jnp.allclose(out, ref, atol=2e-5, rtol=2e-5), "mismatch vs reference"

    print("KERNEL_OK")
</pallas_src>

<mosaic_0001>
module attributes {stable_mosaic.version = 11 : i64} {
  func.func @_upsample_kernel(%arg0: i32, %arg1: i32, %arg2: memref<1x8x17x4xf32, #tpu.memory_space<vmem>>, %arg3: memref<1x1x17x4xf32, #tpu.memory_space<vmem>>, %arg4: memref<16x32xf32, #tpu.memory_space<vmem>>, %arg5: memref<1x32xf32, #tpu.memory_space<vmem>>, %arg6: memref<1x8x16x32xf32, #tpu.memory_space<vmem>>) attributes {dimension_semantics = [#tpu.dimension_semantics<parallel>, #tpu.dimension_semantics<parallel>], iteration_bounds = array<i64: 2, 2>, scalar_prefetch = 0 : i64, scratch_operands = 0 : i64, tpu.core_type = #tpu.core_type<tc>, window_params = [{transform_indices = @transform_0, window_bounds = array<i64: 1, 8, 17, 4>}, {transform_indices = @transform_1, window_bounds = array<i64: 1, 1, 17, 4>}, {pipeline_mode = #tpu.pipeline_mode<synchronous>, transform_indices = @transform_2, window_bounds = array<i64: 16, 32>}, {pipeline_mode = #tpu.pipeline_mode<synchronous>, transform_indices = @transform_3, window_bounds = array<i64: 1, 32>}, {transform_indices = @transform_4, window_bounds = array<i64: 1, 8, 16, 32>}]} {
    %c0 = arith.constant 0 : index
    %c0_0 = arith.constant 0 : index
    %c0_1 = arith.constant 0 : index
    %c0_2 = arith.constant 0 : index
    %0 = vector.load %arg2[%c0, %c0_0, %c0_1, %c0_2] : memref<1x8x17x4xf32, #tpu.memory_space<vmem>>, vector<1x8x17x4xf32>
    %1 = vector.shape_cast %0 : vector<1x8x17x4xf32> to vector<8x17x4xf32>
    %c0_3 = arith.constant 0 : index
    %c0_4 = arith.constant 0 : index
    %c0_5 = arith.constant 0 : index
    %c0_6 = arith.constant 0 : index
    %2 = vector.load %arg3[%c0_3, %c0_4, %c0_5, %c0_6] : memref<1x1x17x4xf32, #tpu.memory_space<vmem>>, vector<1x1x17x4xf32>
    %3 = vector.shape_cast %2 : vector<1x1x17x4xf32> to vector<1x17x4xf32>
    %4 = vector.extract_strided_slice %1 {offsets = [1, 0, 0], sizes = [7, 17, 4], strides = [1, 1, 1]} : vector<8x17x4xf32> to vector<7x17x4xf32>
    %5 = tpu.concatenate %4, %3 in 0 : vector<7x17x4xf32>, vector<1x17x4xf32> -> vector<8x17x4xf32>
    %6 = vector.extract_strided_slice %1 {offsets = [0, 0, 0], sizes = [8, 16, 4], strides = [1, 1, 1]} : vector<8x17x4xf32> to vector<8x16x4xf32>
    %7 = vector.extract_strided_slice %1 {offsets = [0, 1, 0], sizes = [8, 16, 4], strides = [1, 1, 1]} : vector<8x17x4xf32> to vector<8x16x4xf32>
    %8 = vector.extract_strided_slice %5 {offsets = [0, 0, 0], sizes = [8, 16, 4], strides = [1, 1, 1]} : vector<8x17x4xf32> to vector<8x16x4xf32>
    %9 = vector.extract_strided_slice %5 {offsets = [0, 1, 0], sizes = [8, 16, 4], strides = [1, 1, 1]} : vector<8x17x4xf32> to vector<8x16x4xf32>
    %10 = tpu.concatenate %6, %7, %8, %9 in 2 : vector<8x16x4xf32>, vector<8x16x4xf32>, vector<8x16x4xf32>, vector<8x16x4xf32> -> vector<8x16x16xf32>
    %11 = vector.shape_cast %10 : vector<8x16x16xf32> to vector<128x16xf32>
    %c0_7 = arith.constant 0 : index
    %c0_8 = arith.constant 0 : index
    %12 = vector.load %arg4[%c0_7, %c0_8] : memref<16x32xf32, #tpu.memory_space<vmem>>, vector<16x32xf32>
    %cst = arith.constant dense<0.000000e+00> : vector<128x32xf32>
    %13 = tpu.matmul %11, %12, %cst {dimension_numbers = #tpu.dot_dimension_numbers<[1], [0], [0], [1], [0, 0, 1, 1], [], []>} : vector<128x16xf32>, vector<16x32xf32>, vector<128x32xf32> -> vector<128x32xf32>
    %c0_9 = arith.constant 0 : index
    %c0_10 = arith.constant 0 : index
    %14 = vector.load %arg5[%c0_9, %c0_10] : memref<1x32xf32, #tpu.memory_space<vmem>>, vector<1x32xf32>
    %15 = vector.broadcast %14 : vector<1x32xf32> to vector<128x32xf32>
    %16 = arith.addf %13, %15 : vector<128x32xf32>
    %cst_11 = arith.constant 0.000000e+00 : f32
    %17 = vector.broadcast %cst_11 : f32 to vector<128x32xf32>
    %18 = arith.cmpf oge, %16, %17 : vector<128x32xf32>
    %cst_12 = arith.constant 0.00999999977 : f32
    %19 = vector.broadcast %cst_12 : f32 to vector<128x32xf32>
    %20 = arith.mulf %19, %16 : vector<128x32xf32>
    %21 = arith.select %18, %16, %20 : vector<128x32xi1>, vector<128x32xf32>
    %22 = vector.shape_cast %21 : vector<128x32xf32> to vector<1x8x16x32xf32>
    %c0_13 = arith.constant 0 : index
    %c0_14 = arith.constant 0 : index
    %c0_15 = arith.constant 0 : index
    %c0_16 = arith.constant 0 : index
    %23 = vector.load %arg6[%c0_13, %c0_14, %c0_15, %c0_16] : memref<1x8x16x32xf32, #tpu.memory_space<vmem>>, vector<1x8x16x32xf32>
    tpu.vector_store %arg6[%c0_13, %c0_14, %c0_15, %c0_16], %22 {strides = array<i32>} : memref<1x8x16x32xf32, #tpu.memory_space<vmem>>, vector<1x8x16x32xf32>,
    return
  }
  func.func @transform_0(%arg0: i32, %arg1: i32) -> (i32, i32, i32, i32) {
    %c0_i32 = arith.constant 0 : i32
    %c0_i32_0 = arith.constant 0 : i32
    %c0_i32_1 = arith.constant 0 : i32
    return %arg0, %arg1, %c0_i32, %c0_i32_0 : i32, i32, i32, i32
  }
  func.func @transform_1(%arg0: i32, %arg1: i32) -> (i32, i32, i32, i32) {
    %c1_i32 = arith.constant 1 : i32
    %0 = arith.addi %arg1, %c1_i32 : i32
    %c8_i32 = arith.constant 8 : i32
    %1 = arith.muli %0, %c8_i32 : i32
    %c0_i32 = arith.constant 0 : i32
    %c0_i32_0 = arith.constant 0 : i32
    %c0_i32_1 = arith.constant 0 : i32
    return %arg0, %1, %c0_i32, %c0_i32_0 : i32, i32, i32, i32
  }
  func.func @transform_2(%arg0: i32, %arg1: i32) -> (i32, i32) {
    %c0_i32 = arith.constant 0 : i32
    %c0_i32_0 = arith.constant 0 : i32
    %c0_i32_1 = arith.constant 0 : i32
    return %c0_i32, %c0_i32_0 : i32, i32
  }
  func.func @transform_3(%arg0: i32, %arg1: i32) -> (i32, i32) {
    %c0_i32 = arith.constant 0 : i32
    %c0_i32_0 = arith.constant 0 : i32
    %c0_i32_1 = arith.constant 0 : i32
    return %c0_i32, %c0_i32_0 : i32, i32
  }
  func.func @transform_4(%arg0: i32, %arg1: i32) -> (i32, i32, i32, i32) {
    %c0_i32 = arith.constant 0 : i32
    %c0_i32_0 = arith.constant 0 : i32
    %c0_i32_1 = arith.constant 0 : i32
    return %arg0, %arg1, %c0_i32, %c0_i32_0 : i32, i32, i32, i32
  }
}

</mosaic_0001>

<llo_original>
// kernel: tile.8
$region0: #{tile.8}
  #allocation0 [shape = 's32[1]{0}', space=sflag, size = 0x4, scoped, tag = 'scoped memory for tile.8']
  %s0 = inlined_call_operand.vmem [shape: f32[8], index: 0, kind: input, shape index: {}]
  %s1 = inlined_call_operand.vmem [shape: f32[4,8], index: 1, kind: output, shape index: {}]
  // Predicated region
  $region2: #{tile.8} parent=0 // pred_check
    _
  $region3: #{tile.8} parent=0 // pred_check_branch
    %3 = sbr.rel (0) target = $region5
  $region4: #{tile.8} parent=0 // pred_region
    _
  $region5: #{tile.8} parent=0 // pred_fallthru
    _
  %v4 = vld [vmem:[%s0] ss:$0 sm:$0xff]
  %5 = vst [vmem:[%s1] sm:$0xf] %v4

// kernel: tile.9
$region0: #{tile.9}
  %s0 = inlined_call_operand.vmem [shape: f32[4,8], index: 0, kind: input, shape index: {}]
  %s1 = inlined_call_operand.vmem [shape: f32[1,32], index: 1, kind: output, shape index: {}]
  $region1: #{tile.9} parent=0
    #allocation0 [shape = 'u8[4096]{0}', space=vmem, size = 0x1000, scoped, tag = 'scoped mem for output reshape']
    #allocation1 [shape = 'u8[4096]{0}', space=vmem, size = 0x1000, scoped, tag = 'scoped mem for input reshape']
    %s3 = sshllo.u32 0, 4
    %v4 = vld [vmem:[%s0] sm:%s3]
    %5 = vst [vmem:[#allocation1] sm:%s3] %v4
    %v6 = vld [vmem:[#allocation1] sm:$0x1]
    %vm7 = vcmask 64512
    %8 = vst.msk [vmem:[#allocation0] sm:$0x1] %vm7, %v6
    %s9 = scalar_lea.vmem [#allocation1], 3
    %v10 = vld [vmem:[%s9] sm:$0x1]
    %11 = vrot.lane.b32.xlu0 %v10, 24
    %v12 = vpop.permute.xlu0 %11
    %vm13 = vcmask 261312
    %14 = vst.msk [vmem:[#allocation0] sm:$0x1] %vm13, %v12
    %s15 = scalar_lea.vmem [#allocation1], 2
    %v16 = vld [vmem:[%s15] sm:$0x1]
    %17 = vrot.lane.b32.xlu0 %v16, 16
    %v18 = vpop.permute.xlu0 %17
    %vm19 = vcmask 195712
    %20 = vst.msk [vmem:[#allocation0] sm:$0x1] %vm19, %v18
    %s21 = scalar_lea.vmem [#allocation1], 1
    %v22 = vld [vmem:[%s21] sm:$0x1]
    %23 = vrot.lane.b32.xlu0 %v22, 8
    %v24 = vpop.permute.xlu0 %23
    %vm25 = vcmask 130112
    %26 = vst.msk [vmem:[#allocation0] sm:$0x1] %vm25, %v24
    %s28 = sshllo.u32 0, 1
    %v30 = vld [vmem:[#allocation0] sm:%s28]
    %s31 = sshllo.u32 0, 1
    %32 = vst [vmem:[%s1] sm:%s31] %v30

// kernel: upsampling_forward.1
$region0: #{upsampling_forward.1}
  #allocation0 [shape = 'u32[]', space=smem, size = 0x4, offset = 0x4, fixed_abs, tag = 'smem constant byte address 0x4 - core index']
  #allocation1 [shape = 'u32[144,128]{1,0:T(1,128)}', space=vmem, size = 0x12000, scoped, tag = 'internal scratch']
  %s0 = inlined_call_operand.vmem [shape: f32[2,17,17,4], index: 0, kind: input, shape index: {}, may-alias: {0,1}]
  %s1 = inlined_call_operand.vmem [shape: f32[2,17,17,4], index: 1, kind: input, shape index: {}, may-alias: {0,1}]
  %s2 = inlined_call_operand.vmem [shape: f32[16,32], index: 2, kind: input, shape index: {}]
  %s3 = inlined_call_operand.vmem [shape: f32[1,32], index: 3, kind: input, shape index: {}]
  %s4 = inlined_call_operand.vmem [shape: f32[2,16,16,32], index: 4, kind: output, shape index: {}]
  %s5 = sld [smem:[#allocation0]]
  $region49: #{upsampling_forward.1} parent=0
    _
  %s7 = ssub.s32 1, %s5
  %s8 = scalar_select 0, %s7, %s5
  loop: start=0, step=1, limit=6
  $region2: #{upsampling_forward.1} parent=0 // loop_pre_header
    _
  $region3: #{upsampling_forward.1} parent=0 // loop_header
    %s10 = sphi 0, %s14
    %p11 = scmp.ge.s32.totalorder %s10, 6
    %s17 = sphi 0, %s29
    %s18 = sphi 0, %s25
    %s19 = sphi 0, %s17
    %s20 = sphi 0, %s18
    %s21 = sphi 0, %s19
    %s22 = sphi 0, %s20
    %s34 = sphi 0, %s36
    %s37 = sphi 0, %s34
    %s38 = sphi 0, %s37
    %s54 = sphi 0, %s38
    %s66 = sphi 0, %s68
    %s69 = sphi 0, %s66
    %s70 = sphi 0, %s69
    %s86 = sphi 0, %s70
    %s90 = sphi 0, %s90
    %s92 = sphi 0, %s90
    %s93 = sphi 0, %s92
    %s107 = sphi 0, %s93
    %s111 = sphi 0, %s111
    %s113 = sphi 0, %s111
    %s114 = sphi 0, %s113
    %s128 = sphi 0, %s114
    %s136 = sphi 0, %s138
    %s139 = sphi 0, %s136
    %s140 = sphi 0, %s139
    %s156 = sphi 0, %s140
  $region4: #{upsampling_forward.1} parent=0 // loop_header_branch
    %13 = sbr.rel (%p11) target = $region8
  $region5: #{upsampling_forward.1} parent=0 // loop_body
    %s15 = ssub.s32 %s10, 1
    %s16 = ssub.s32 %s10, 2
    %s23 = sadd.s32 1, %s18
    %p24 = scmp.ge.s32.totalorder %s23, 2
    %s25 = scalar_select %p24, 0, %s23
    %s26 = sadd.s32 1, %s17
    %s27 = scalar_select %p24, %s26, %s17
    %p28 = scmp.ge.s32.totalorder %s27, 2
    %s29 = scalar_select %p28, 0, %s27
    %s30 = ssub.s32 %s17, %s29
    %s31 = ssub.s32 %s18, %s25
    %s32 = sor.u32 %s30, %s31
    %p33 = scmp.eq.s32.totalorder %s32, 0
    %s35 = sadd.s32 %s34, 1
    %s36 = scalar_select %p33, %s34, %s35
    %p39 = pneg %p33
    %p40 = scmp.eq.s32.totalorder %s10, 3
    %p41 = por %p39, %p40
    %p42 = scmp.ne.s32.totalorder %s34, %s37
    %p43 = scmp.eq.s32.totalorder %s10, 0
    %p44 = por %p42, %p43
    %p45 = scmp.ne.s32.totalorder %s34, %s37
    %p46 = scmp.eq.s32.totalorder %s15, 3
    %p47 = por %p45, %p46
    %p48 = scmp.ne.s32.totalorder %s37, %s38
    %p49 = scmp.eq.s32.totalorder %s15, 0
    %p50 = por %p48, %p49
    %p51 = scmp.ne.s32.totalorder %s37, %s38
    %p52 = scmp.eq.s32.totalorder %s16, 3
    %p53 = por %p51, %p52
    %p55 = scmp.ne.s32.totalorder %s38, %s54
    %p56 = scmp.eq.s32.totalorder %s16, 0
    %p57 = por %p55, %p56
    %s58 = sadd.s32 %s18, 1
    %s59 = smul.u32 %s58, 8
    %s60 = sadd.s32 %s25, 1
    %s61 = smul.u32 %s60, 8
    %s62 = ssub.s32 %s17, %s29
    %s63 = ssub.s32 %s59, %s61
    %s64 = sor.u32 %s62, %s63
    %p65 = scmp.eq.s32.totalorder %s64, 0
    %s67 = sadd.s32 %s66, 1
    %s68 = scalar_select %p65, %s66, %s67
    %p71 = pneg %p65
    %p72 = scmp.eq.s32.totalorder %s10, 3
    %p73 = por %p71, %p72
    %p74 = scmp.ne.s32.totalorder %s66, %s69
    %p75 = scmp.eq.s32.totalorder %s10, 0
    %p76 = por %p74, %p75
    %p77 = scmp.ne.s32.totalorder %s66, %s69
    %p78 = scmp.eq.s32.totalorder %s15, 3
    %p79 = por %p77, %p78
    %p80 = scmp.ne.s32.totalorder %s69, %s70
    %p81 = scmp.eq.s32.totalorder %s15, 0
    %p82 = por %p80, %p81
    %p83 = scmp.ne.s32.totalorder %s69, %s70
    %p84 = scmp.eq.s32.totalorder %s16, 3
    %p85 = por %p83, %p84
    %p87 = scmp.ne.s32.totalorder %s70, %s86
    %p88 = scmp.eq.s32.totalorder %s16, 0
    %p89 = por %p87, %p88
    %s91 = sadd.s32 %s90, 1
    %p94 = scmp.eq.s32.totalorder %s10, 3
    %p95 = scmp.ne.s32.totalorder %s90, %s92
    %p96 = scmp.eq.s32.totalorder %s10, 0
    %p97 = por %p95, %p96
    %p98 = scmp.ne.s32.totalorder %s90, %s92
    %p99 = scmp.eq.s32.totalorder %s15, 3
    %p100 = por %p98, %p99
    %p101 = scmp.ne.s32.totalorder %s92, %s93
    %p102 = scmp.eq.s32.totalorder %s15, 0
    %p103 = por %p101, %p102
    %p104 = scmp.ne.s32.totalorder %s92, %s93
    %p105 = scmp.eq.s32.totalorder %s16, 3
    %p106 = por %p104, %p105
    %p108 = scmp.ne.s32.totalorder %s93, %s107
    %p109 = scmp.eq.s32.totalorder %s16, 0
    %p110 = por %p108, %p109
    %s112 = sadd.s32 %s111, 1
    %p115 = scmp.eq.s32.totalorder %s10, 3
    %p116 = scmp.ne.s32.totalorder %s111, %s113
    %p117 = scmp.eq.s32.totalorder %s10, 0
    %p118 = por %p116, %p117
    %p119 = scmp.ne.s32.totalorder %s111, %s113
    %p120 = scmp.eq.s32.totalorder %s15, 3
    %p121 = por %p119, %p120
    %p122 = scmp.ne.s32.totalorder %s113, %s114
    %p123 = scmp.eq.s32.totalorder %s15, 0
    %p124 = por %p122, %p123
    %p125 = scmp.ne.s32.totalorder %s113, %s114
    %p126 = scmp.eq.s32.totalorder %s16, 3
    %p127 = por %p125, %p126
    %p129 = scmp.ne.s32.totalorder %s114, %s128
    %p130 = scmp.eq.s32.totalorder %s16, 0
    %p131 = por %p129, %p130
    %s132 = ssub.s32 %s17, %s29
    %s133 = ssub.s32 %s18, %s25
    %s134 = sor.u32 %s132, %s133
    %p135 = scmp.eq.s32.totalorder %s134, 0
    %s137 = sadd.s32 %s136, 1
    %s138 = scalar_select %p135, %s136, %s137
    %p141 = pneg %p135
    %p142 = scmp.eq.s32.totalorder %s10, 3
    %p143 = por %p141, %p142
    %p144 = scmp.ne.s32.totalorder %s136, %s139
    %p145 = scmp.eq.s32.totalorder %s10, 0
    %p146 = por %p144, %p145
    %p147 = scmp.ne.s32.totalorder %s136, %s139
    %p148 = scmp.eq.s32.totalorder %s15, 3
    %p149 = por %p147, %p148
    %p150 = scmp.ne.s32.totalorder %s139, %s140
    %p151 = scmp.eq.s32.totalorder %s15, 0
    %p152 = por %p150, %p151
    %p153 = scmp.ne.s32.totalorder %s139, %s140
    %p154 = scmp.eq.s32.totalorder %s16, 3
    %p155 = por %p153, %p154
    %p157 = scmp.ne.s32.totalorder %s140, %s156
    %p158 = scmp.eq.s32.totalorder %s16, 0
    %p159 = por %p157, %p158
    %p160 = scmp.le.s32.totalorder 1, %s10
    %p161 = scmp.lt.s32.totalorder %s10, 5
    %p162 = pnand %p160, %p161
    %p163 = pneg %p162
    // Predicated region
    $region9: #{upsampling_forward.1} parent=5 // pred_check
      _
    $region10: #{upsampling_forward.1} parent=5 // pred_check_branch
      %165 = sbr.rel (%p162) target = $region12
    $region11: #{upsampling_forward.1} parent=5 // pred_region
      %s166 = ssub.s32 %s10, 1
      // Predicated region
      $region13: #{upsampling_forward.1} parent=11 // pred_check
        %p167 = pneg %p103
      $region14: #{upsampling_forward.1} parent=11 // pred_check_branch
        %169 = sbr.rel (%p167) target = $region16
      $region15: #{upsampling_forward.1} parent=11 // pred_region
        _
      $region16: #{upsampling_forward.1} parent=11 // pred_fallthru
        _
      // Predicated region
      $region17: #{upsampling_forward.1} parent=11 // pred_check
        %p170 = pneg %p124
      $region18: #{upsampling_forward.1} parent=11 // pred_check_branch
        %172 = sbr.rel (%p170) target = $region20
      $region19: #{upsampling_forward.1} parent=11 // pred_region
        _
      $region20: #{upsampling_forward.1} parent=11 // pred_fallthru
        _
    $region12: #{upsampling_forward.1} parent=5 // pred_fallthru
      _
    %p173 = scmp.lt.s32.totalorder %s10, 4
    // Predicated region
    $region21: #{upsampling_forward.1} parent=5 // pred_check
      %p174 = pneg %p173
    $region22: #{upsampling_forward.1} parent=5 // pred_check_branch
      %176 = sbr.rel (%p174) target = $region24
    $region23: #{upsampling_forward.1} parent=5 // pred_region
      // Predicated region
      $region25: #{upsampling_forward.1} parent=23 // pred_check
        %p177 = pneg %p44
      $region26: #{upsampling_forward.1} parent=23 // pred_check_branch
        %179 = sbr.rel (%p177) target = $region28
      $region27: #{upsampling_forward.1} parent=23 // pred_region
        %s180 = smul.u32 8, %s18
        %s181 = ssub.s32 17, %s180
        %p182 = scmp.lt.s32.totalorder %s181, 8
        %s183 = scalar_select %p182, %s181, 8
        %s184 = smul.u32 128, %s183
        %s185 = smul.u32 %s184, 3
        %p186 = scmp.lt.s32.totalorder %s17, 1
        %s187 = scalar_select %p186, %s17, 1
        %p188 = scmp.lt.s32.totalorder %s180, 16
        %s189 = scalar_select %p188, %s180, 16
        %s190 = smul.addr %s189, 3
        %s191 = smul.addr %s187, 51
        %s192 = sadd.s32 %s190, %s191
        %s193 = smul.addr %s192, 8
        %s194 = scalar_lea.vmem %s0, %s193
        %s195 = smul.u32 8, %s18
        %s196 = ssub.s32 17, %s195
        %p197 = scmp.lt.s32.totalorder %s196, 8
        %s198 = scalar_select %p197, %s196, 8
        %s199 = smul.u32 128, %s198
        %s200 = smul.u32 %s199, 3
      $region28: #{upsampling_forward.1} parent=23 // pred_fallthru
        _
      // Predicated region
      $region29: #{upsampling_forward.1} parent=23 // pred_check
        %p201 = pneg %p76
      $region30: #{upsampling_forward.1} parent=23 // pred_check_branch
        %203 = sbr.rel (%p201) target = $region32
      $region31: #{upsampling_forward.1} parent=23 // pred_region
        %s204 = sadd.s32 %s18, 1
        %s205 = smul.u32 %s204, 8
        %p206 = scmp.lt.s32.totalorder %s17, 1
        %s207 = scalar_select %p206, %s17, 1
        %p208 = scmp.lt.s32.totalorder %s205, 16
        %s209 = scalar_select %p208, %s205, 16
        %s210 = smul.addr %s209, 3
        %s211 = smul.addr %s207, 51
        %s212 = sadd.s32 %s210, %s211
        %s213 = smul.addr %s212, 8
        %s214 = scalar_lea.vmem %s1, %s213
        %s215 = sadd.s32 %s18, 1
        %s216 = smul.u32 %s215, 8
      $region32: #{upsampling_forward.1} parent=23 // pred_fallthru
        _
    $region24: #{upsampling_forward.1} parent=5 // pred_fallthru
      _
    %p217 = scmp.le.s32.totalorder 1, %s10
    %p218 = scmp.lt.s32.totalorder %s10, 5
    %p219 = pnand %p217, %p218
    %p220 = pneg %p219
    // Predicated region
    $region33: #{upsampling_forward.1} parent=5 // pred_check
      _
    $region34: #{upsampling_forward.1} parent=5 // pred_check_branch
      %222 = sbr.rel (%p219) target = $region36
    $region35: #{upsampling_forward.1} parent=5 // pred_region
      %s223 = ssub.s32 %s10, 1
      %s224 = smul.u32 8, %s20
      %s225 = ssub.s32 17, %s224
      %p226 = scmp.lt.s32.totalorder %s225, 8
      %s227 = scalar_select %p226, %s225, 8
      %s228 = smul.u32 128, %s227
      %s229 = smul.u32 %s228, 3
      %p230 = scmp.lt.s32.totalorder %s19, 1
      %s231 = scalar_select %p230, %s19, 1
      %p232 = scmp.lt.s32.totalorder %s224, 16
      %s233 = scalar_select %p232, %s224, 16
      %s234 = smul.addr %s233, 3
      %s235 = smul.addr %s231, 51
      %s236 = sadd.s32 %s234, %s235
      %s237 = smul.addr %s236, 8
      %s238 = scalar_lea.vmem %s0, %s237
      %p239 = pneg %p50
      %p240 = pneg %p47
      %s241 = sadd.s32 %s20, 1
      %s242 = smul.u32 %s241, 8
      %p243 = scmp.lt.s32.totalorder %s19, 1
      %s244 = scalar_select %p243, %s19, 1
      %p245 = scmp.lt.s32.totalorder %s242, 16
      %s246 = scalar_select %p245, %s242, 16
      %s247 = smul.addr %s246, 3
      %s248 = smul.addr %s244, 51
      %s249 = sadd.s32 %s247, %s248
      %s250 = smul.addr %s249, 8
      %s251 = scalar_lea.vmem %s1, %s250
      %p252 = pneg %p82
      %p253 = pneg %p79
      %p254 = pneg %p103
      %p255 = pneg %p100
      %p256 = pneg %p124
      %p257 = pneg %p121
      %p258 = pneg %p152
      %p259 = pneg %p149
      %s260 = smul.u32 8, %s20
      %p261 = scmp.lt.s32.totalorder %s19, 1
      %s262 = scalar_select %p261, %s19, 1
      %p263 = scmp.lt.s32.totalorder %s260, 15
      %s264 = scalar_select %p263, %s260, 15
      %s265 = smul.addr %s264, 2
      %s266 = smul.addr %s262, 32
      %s267 = sadd.s32 %s265, %s266
      %s268 = smul.addr %s267, 8
      %s269 = scalar_lea.vmem %s4, %s268
      %s270 = smul.u32 8, %s20
      %s271 = ssub.s32 17, %s270
      %p272 = scmp.lt.s32.totalorder %s271, 8
      %s273 = scalar_select %p272, %s271, 8
      %s274 = smul.u32 128, %s273
      %s275 = smul.u32 %s274, 3
      %p276 = scmp.lt.s32.totalorder %s19, 1
      %s277 = scalar_select %p276, %s19, 1
      %p278 = scmp.lt.s32.totalorder %s270, 16
      %s279 = scalar_select %p278, %s270, 16
      %s280 = smul.addr %s279, 3
      %s281 = smul.addr %s277, 51
      %s282 = sadd.s32 %s280, %s281
      %s283 = smul.addr %s282, 8
      %s284 = scalar_lea.vmem %s0, %s283
      %s285 = smul.u32 8, %s20
      %s286 = ssub.s32 17, %s285
      %p287 = scmp.lt.s32.totalorder %s286, 8
      %s288 = scalar_select %p287, %s286, 8
      %s289 = smul.u32 128, %s288
      %s290 = smul.u32 %s289, 3
      %s291 = sadd.s32 %s20, 1
      %s292 = smul.u32 %s291, 8
      %p293 = scmp.lt.s32.totalorder %s19, 1
      %s294 = scalar_select %p293, %s19, 1
      %p295 = scmp.lt.s32.totalorder %s292, 16
      %s296 = scalar_select %p295, %s292, 16
      %s297 = smul.addr %s296, 3
      %s298 = smul.addr %s294, 51
      %s299 = sadd.s32 %s297, %s298
      %s300 = smul.addr %s299, 8
      %s301 = scalar_lea.vmem %s1, %s300
      %s302 = sadd.s32 %s20, 1
      %s303 = smul.u32 %s302, 8
      %s304 = smul.u32 8, %s20
      %p305 = scmp.lt.s32.totalorder %s19, 1
      %s306 = scalar_select %p305, %s19, 1
      %p307 = scmp.lt.s32.totalorder %s304, 15
      %s308 = scalar_select %p307, %s304, 15
      %s309 = smul.addr %s308, 2
      %s310 = smul.addr %s306, 32
      %s311 = sadd.s32 %s309, %s310
      %s312 = smul.addr %s311, 8
      %s313 = scalar_lea.vmem %s4, %s312
      %s314 = smul.u32 8, %s20
      %v315 = vld [vmem:[%s284] sm:$0xff]
      %v316 = vld [vmem:[%s284 + $0x8] sm:$0xff]
      %v317 = vld [vmem:[%s284 + $0x10] sm:$0x1]
      %v318 = vld [vmem:[%s284 + $0x18] sm:$0xff]
      %v319 = vld [vmem:[%s284 + $0x20] sm:$0xff]
      %v320 = vld [vmem:[%s284 + $0x28] sm:$0x1]
      %v321 = vld [vmem:[%s284 + $0x30] sm:$0xff]
      %v322 = vld [vmem:[%s284 + $0x38] sm:$0xff]
      %v323 = vld [vmem:[%s284 + $0x40] sm:$0x1]
      %v324 = vld [vmem:[%s284 + $0x48] sm:$0xff]
      %v325 = vld [vmem:[%s284 + $0x50] sm:$0xff]
      %v326 = vld [vmem:[%s284 + $0x58] sm:$0x1]
      %v327 = vld [vmem:[%s284 + $0x60] sm:$0xff]
      %v328 = vld [vmem:[%s284 + $0x68] sm:$0xff]
      %v329 = vld [vmem:[%s284 + $0x70] sm:$0x1]
      %v330 = vld [vmem:[%s284 + $0x78] sm:$0xff]
      %v331 = vld [vmem:[%s284 + $0x80] sm:$0xff]
      %v332 = vld [vmem:[%s284 + $0x88] sm:$0x1]
      %v333 = vld [vmem:[%s284 + $0x90] sm:$0xff]
      %v334 = vld [vmem:[%s284 + $0x98] sm:$0xff]
      %v335 = vld [vmem:[%s284 + $0xa0] sm:$0x1]
      %v336 = vld [vmem:[%s284 + $0xa8] sm:$0xff]
      %v337 = vld [vmem:[%s284 + $0xb0] sm:$0xff]
      %v338 = vld [vmem:[%s284 + $0xb8] sm:$0x1]
      %v339 = vld [vmem:[%s301] sm:$0xff]
      %v340 = vld [vmem:[%s301 + $0x8] sm:$0xff]
      %v341 = vld [vmem:[%s301 + $0x10] sm:$0x1]
      %vm366 = vcmask 1046528
      %v367 = vrot.slane %v315, 1
      %v368 = vrot.slane %v316, 1
      %v369 = vsel %vm366, %v367, %v368
      %v370 = vrot.slane %v317, 1
      %v371 = vsel %vm366, %v368, %v370
      %v372 = vrot.slane %v318, 1
      %v373 = vrot.slane %v319, 1
      %v374 = vsel %vm366, %v372, %v373
      %v375 = vrot.slane %v320, 1
      %v376 = vsel %vm366, %v373, %v375
      %v377 = vrot.slane %v321, 1
      %v378 = vrot.slane %v322, 1
      %v379 = vsel %vm366, %v377, %v378
      %v380 = vrot.slane %v323, 1
      %v381 = vsel %vm366, %v378, %v380
      %v382 = vrot.slane %v324, 1
      %v383 = vrot.slane %v325, 1
      %v384 = vsel %vm366, %v382, %v383
      %v385 = vrot.slane %v326, 1
      %v386 = vsel %vm366, %v383, %v385
      %v387 = vrot.slane %v327, 1
      %v388 = vrot.slane %v328, 1
      %v389 = vsel %vm366, %v387, %v388
      %v390 = vrot.slane %v329, 1
      %v391 = vsel %vm366, %v388, %v390
      %v392 = vrot.slane %v330, 1
      %v393 = vrot.slane %v331, 1
      %v394 = vsel %vm366, %v392, %v393
      %v395 = vrot.slane %v332, 1
      %v396 = vsel %vm366, %v393, %v395
      %v397 = vrot.slane %v333, 1
      %v398 = vrot.slane %v334, 1
      %v399 = vsel %vm366, %v397, %v398
      %v400 = vrot.slane %v335, 1
      %v401 = vsel %vm366, %v398, %v400
      %v402 = vrot.slane %v336, 1
      %v403 = vrot.slane %v337, 1
      %v404 = vsel %vm366, %v402, %v403
      %v405 = vrot.slane %v338, 1
      %v406 = vsel %vm366, %v403, %v405
      %407 = vrot.lane.b32.xlu0 %v369, 4
      %v408 = vpop.permute.xlu0 %407
      %409 = vrot.lane.b32.xlu0 %v371, 4
      %v410 = vpop.permute.xlu0 %409
      %411 = vrot.lane.b32.xlu0 %v374, 4
      %v412 = vpop.permute.xlu0 %411
      %413 = vrot.lane.b32.xlu0 %v376, 4
      %v414 = vpop.permute.xlu0 %413
      %415 = vrot.lane.b32.xlu0 %v379, 4
      %v416 = vpop.permute.xlu0 %415
      %417 = vrot.lane.b32.xlu0 %v381, 4
      %v418 = vpop.permute.xlu0 %417
      %419 = vrot.lane.b32.xlu0 %v384, 4
      %v420 = vpop.permute.xlu0 %419
      %421 = vrot.lane.b32.xlu0 %v386, 4
      %v422 = vpop.permute.xlu0 %421
      %423 = vrot.lane.b32.xlu0 %v389, 4
      %v424 = vpop.permute.xlu0 %423
      %425 = vrot.lane.b32.xlu0 %v391, 4
      %v426 = vpop.permute.xlu0 %425
      %427 = vrot.lane.b32.xlu0 %v394, 4
      %v428 = vpop.permute.xlu0 %427
      %429 = vrot.lane.b32.xlu0 %v396, 4
      %v430 = vpop.permute.xlu0 %429
      %431 = vrot.lane.b32.xlu0 %v399, 4
      %v432 = vpop.permute.xlu0 %431
      %433 = vrot.lane.b32.xlu0 %v401, 4
      %v434 = vpop.permute.xlu0 %433
      %435 = vrot.lane.b32.xlu0 %v404, 4
      %v436 = vpop.permute.xlu0 %435
      %437 = vrot.lane.b32.xlu0 %v406, 4
      %v438 = vpop.permute.xlu0 %437
      %457 = vrot.lane.b32.xlu0 %v318, 8
      %v458 = vpop.permute.xlu0 %457
      %459 = vrot.lane.b32.xlu0 %v319, 8
      %v460 = vpop.permute.xlu0 %459
      %461 = vrot.lane.b32.xlu0 %v321, 8
      %v462 = vpop.permute.xlu0 %461
      %463 = vrot.lane.b32.xlu0 %v322, 8
      %v464 = vpop.permute.xlu0 %463
      %465 = vrot.lane.b32.xlu0 %v324, 8
      %v466 = vpop.permute.xlu0 %465
      %467 = vrot.lane.b32.xlu0 %v325, 8
      %v468 = vpop.permute.xlu0 %467
      %469 = vrot.lane.b32.xlu0 %v327, 8
      %v470 = vpop.permute.xlu0 %469
      %471 = vrot.lane.b32.xlu0 %v328, 8
      %v472 = vpop.permute.xlu0 %471
      %473 = vrot.lane.b32.xlu0 %v330, 8
      %v474 = vpop.permute.xlu0 %473
      %475 = vrot.lane.b32.xlu0 %v331, 8
      %v476 = vpop.permute.xlu0 %475
      %477 = vrot.lane.b32.xlu0 %v333, 8
      %v478 = vpop.permute.xlu0 %477
      %479 = vrot.lane.b32.xlu0 %v334, 8
      %v480 = vpop.permute.xlu0 %479
      %481 = vrot.lane.b32.xlu0 %v336, 8
      %v482 = vpop.permute.xlu0 %481
      %483 = vrot.lane.b32.xlu0 %v337, 8
      %v484 = vpop.permute.xlu0 %483
      %485 = vrot.lane.b32.xlu0 %v339, 8
      %v486 = vpop.permute.xlu0 %485
      %487 = vrot.lane.b32.xlu0 %v340, 8
      %v488 = vpop.permute.xlu0 %487
      %v506 = vrot.slane %v339, 1
      %v507 = vrot.slane %v340, 1
      %v508 = vsel %vm366, %v506, %v507
      %v509 = vrot.slane %v341, 1
      %v510 = vsel %vm366, %v507, %v509
      %511 = vrot.lane.b32.xlu0 %v374, 12
      %v512 = vpop.permute.xlu0 %511
      %513 = vrot.lane.b32.xlu0 %v376, 12
      %v514 = vpop.permute.xlu0 %513
      %515 = vrot.lane.b32.xlu0 %v379, 12
      %v516 = vpop.permute.xlu0 %515
      %517 = vrot.lane.b32.xlu0 %v381, 12
      %v518 = vpop.permute.xlu0 %517
      %519 = vrot.lane.b32.xlu0 %v384, 12
      %v520 = vpop.permute.xlu0 %519
      %521 = vrot.lane.b32.xlu0 %v386, 12
      %v522 = vpop.permute.xlu0 %521
      %523 = vrot.lane.b32.xlu0 %v389, 12
      %v524 = vpop.permute.xlu0 %523
      %525 = vrot.lane.b32.xlu0 %v391, 12
      %v526 = vpop.permute.xlu0 %525
      %527 = vrot.lane.b32.xlu0 %v394, 12
      %v528 = vpop.permute.xlu0 %527
      %529 = vrot.lane.b32.xlu0 %v396, 12
      %v530 = vpop.permute.xlu0 %529
      %531 = vrot.lane.b32.xlu0 %v399, 12
      %v532 = vpop.permute.xlu0 %531
      %533 = vrot.lane.b32.xlu0 %v401, 12
      %v534 = vpop.permute.xlu0 %533
      %535 = vrot.lane.b32.xlu0 %v404, 12
      %v536 = vpop.permute.xlu0 %535
      %537 = vrot.lane.b32.xlu0 %v406, 12
      %v538 = vpop.permute.xlu0 %537
      %539 = vrot.lane.b32.xlu0 %v508, 12
      %v540 = vpop.permute.xlu0 %539
      %541 = vrot.lane.b32.xlu0 %v510, 12
      %v542 = vpop.permute.xlu0 %541
      %vm559 = vcmask 31744
      %v560 = vsel %vm559, %v315, %v408
      %v561 = vsel %vm559, %v316, %v410
      %v562 = vsel %vm559, %v318, %v412
      %v563 = vsel %vm559, %v319, %v414
      %v564 = vsel %vm559, %v321, %v416
      %v565 = vsel %vm559, %v322, %v418
      %v566 = vsel %vm559, %v324, %v420
      %v567 = vsel %vm559, %v325, %v422
      %v568 = vsel %vm559, %v327, %v424
      %v569 = vsel %vm559, %v328, %v426
      %v570 = vsel %vm559, %v330, %v428
      %v571 = vsel %vm559, %v331, %v430
      %v572 = vsel %vm559, %v333, %v432
      %v573 = vsel %vm559, %v334, %v434
      %v574 = vsel %vm559, %v336, %v436
      %v575 = vsel %vm559, %v337, %v438
      %vm576 = vcmask 64512
      %v577 = vsel %vm576, %v560, %v458
      %v578 = vsel %vm576, %v561, %v460
      %v579 = vsel %vm576, %v562, %v462
      %v580 = vsel %vm576, %v563, %v464
      %v581 = vsel %vm576, %v564, %v466
      %v582 = vsel %vm576, %v565, %v468
      %v583 = vsel %vm576, %v566, %v470
      %v584 = vsel %vm576, %v567, %v472
      %v585 = vsel %vm576, %v568, %v474
      %v586 = vsel %vm576, %v569, %v476
      %v587 = vsel %vm576, %v570, %v478
      %v588 = vsel %vm576, %v571, %v480
      %v589 = vsel %vm576, %v572, %v482
      %v590 = vsel %vm576, %v573, %v484
      %v591 = vsel %vm576, %v574, %v486
      %v592 = vsel %vm576, %v575, %v488
      %vm593 = vcmask 97280
      %v594 = vsel %vm593, %v577, %v512
      %v595 = vsel %vm593, %v578, %v514
      %v596 = vsel %vm593, %v579, %v516
      %v597 = vsel %vm593, %v580, %v518
      %v598 = vsel %vm593, %v581, %v520
      %v599 = vsel %vm593, %v582, %v522
      %v600 = vsel %vm593, %v583, %v524
      %v601 = vsel %vm593, %v584, %v526
      %v602 = vsel %vm593, %v585, %v528
      %v603 = vsel %vm593, %v586, %v530
      %v604 = vsel %vm593, %v587, %v532
      %v605 = vsel %vm593, %v588, %v534
      %v606 = vsel %vm593, %v589, %v536
      %v607 = vsel %vm593, %v590, %v538
      %v608 = vsel %vm593, %v591, %v540
      %v609 = vsel %vm593, %v592, %v542
      %v610 = vld [vmem:[%s2] sm:$0xff]
      %v611 = vld [vmem:[%s2 + $0x8] sm:$0xff]
      %v612 = vld [vmem:[%s3] sm:$0x1]
      %v614 = vlaneseq
      %v615 = vshrl.u32 %v614, 7
      %v616 = vsub.s32 0, %v615
      %v617 = vrot.slane %v612, %v616
      %vm619 = vcmask 130048
      %v621 = vsel %vm619, %v594, 0
      %v624 = vsel %vm619, %v595, 0
      %v627 = vsel %vm619, %v596, 0
      %v630 = vsel %vm619, %v597, 0
      %v633 = vsel %vm619, %v598, 0
      %v636 = vsel %vm619, %v599, 0
      %v639 = vsel %vm619, %v600, 0
      %v642 = vsel %vm619, %v601, 0
      %v645 = vsel %vm619, %v602, 0
      %v648 = vsel %vm619, %v603, 0
      %v651 = vsel %vm619, %v604, 0
      %v654 = vsel %vm619, %v605, 0
      %v657 = vsel %vm619, %v606, 0
      %v660 = vsel %vm619, %v607, 0
      %v663 = vsel %vm619, %v608, 0
      %v666 = vsel %vm619, %v609, 0
      %668 = vmatprep.subr.mxu0 0.0
      %669 = vmatpush1.msra.mxu0 %v610
      %670 = vmatprep.subr.mxu0 0.0
      %671 = vmatpush1.msra.mxu0 %v611
      %672 = vmatprep.subr.mxu0 0.0
      %673 = vmatpush1.msra.mxu0 0.0
      %674 = vmatprep.subr.mxu0 0.0
      %675 = vmatpush1.msra.mxu0 0.0
      %676 = vmatprep.subr.mxu0 0.0
      %677 = vmatpush1.msra.mxu0 0.0
      %678 = vmatprep.subr.mxu0 0.0
      %679 = vmatpush1.msra.mxu0 0.0
      %680 = vmatprep.subr.mxu0 0.0
      %681 = vmatpush1.msra.mxu0 0.0
      %682 = vmatprep.subr.mxu0 0.0
      %683 = vmatpush1.msra.mxu0 0.0
      %684 = vmatprep.subr.mxu0 0.0
      %685 = vmatpush1.msra.mxu0 0.0
      %686 = vmatprep.subr.mxu0 0.0
      %687 = vmatpush1.msra.mxu0 0.0
      %688 = vmatprep.subr.mxu0 0.0
      %689 = vmatpush1.msra.mxu0 0.0
      %690 = vmatprep.subr.mxu0 0.0
      %691 = vmatpush1.msra.mxu0 0.0
      %692 = vmatprep.subr.mxu0 0.0
      %693 = vmatpush1.msra.mxu0 0.0
      %694 = vmatprep.subr.mxu0 0.0
      %695 = vmatpush1.msra.mxu0 0.0
      %696 = vmatprep.subr.mxu0 0.0
      %697 = vmatpush1.msra.mxu0 0.0
      %698 = vmatprep.subr.mxu0 0.0
      %699 = vmatpush1.msra.mxu0 0.0
      %700 = vmatprep.subr.mxu0 0.0
      %701 = vmatpush1.msra.mxu0 0.0
      %702 = vmatprep.subr.mxu0 0.0
      %703 = vmatpush1.msra.mxu0 0.0
      %704 = vmatprep.subr.mxu0 0.0
      %705 = vmatpush1.msra.mxu0 0.0
      %706 = vmatprep.subr.mxu0 0.0
      %707 = vmatpush1.msra.mxu0 0.0
      %708 = vmatprep.subr.mxu0 0.0
      %709 = vmatpush1.msra.mxu0 0.0
      %710 = vmatprep.subr.mxu0 0.0
      %711 = vmatpush1.msra.mxu0 0.0
      %712 = vmatprep.subr.mxu0 0.0
      %713 = vmatpush1.msra.mxu0 0.0
      %714 = vmatprep.subr.mxu0 0.0
      %715 = vmatpush1.msra.mxu0 0.0
      %716 = vmatprep.subr.mxu0 0.0
      %717 = vmatpush1.msra.mxu0 0.0
      %718 = vmatprep.subr.mxu0 0.0
      %719 = vmatpush1.msra.mxu0 0.0
      %720 = vmatprep.subr.mxu0 0.0
      %721 = vmatpush1.msra.mxu0 0.0
      %722 = vmatprep.subr.mxu0 0.0
      %723 = vmatpush1.msra.mxu0 0.0
      %724 = vmatprep.subr.mxu0 0.0
      %725 = vmatpush1.msra.mxu0 0.0
      %726 = vmatprep.subr.mxu0 0.0
      %727 = vmatpush1.msra.mxu0 0.0
      %728 = vmatprep.subr.mxu0 0.0
      %729 = vmatpush1.msra.mxu0 0.0
      %730 = vmatprep.subr.mxu0 0.0
      %731 = vmatpush1.msra.mxu0 0.0
      %732 = vmatprep.mubr.f32.mxu0 0.0
      %733 = vmatmul.mubr.f32.gmra.mrb[0].mxu0 %v621
      %v734 = vpop.f32.mrb[0].mxu0
      %v735 = vadd.f32 %v617, %v734
      %v736 = vpop.f32.mrb[0].mxu0
      %737 = vmatprep.mubr.f32.mxu0 0.0
      %738 = vmatmul.mubr.f32.gmra.mrb[0].mxu0 %v624
      %v739 = vpop.f32.mrb[0].mxu0
      %v740 = vadd.f32 %v617, %v739
      %v741 = vpop.f32.mrb[0].mxu0
      %742 = vmatprep.mubr.f32.mxu0 0.0
      %743 = vmatmul.mubr.f32.gmra.mrb[0].mxu0 %v627
      %v744 = vpop.f32.mrb[0].mxu0
      %v745 = vadd.f32 %v617, %v744
      %v746 = vpop.f32.mrb[0].mxu0
      %747 = vmatprep.mubr.f32.mxu0 0.0
      %748 = vmatmul.mubr.f32.gmra.mrb[0].mxu0 %v630
      %v749 = vpop.f32.mrb[0].mxu0
      %v750 = vadd.f32 %v617, %v749
      %v751 = vpop.f32.mrb[0].mxu0
      %752 = vmatprep.mubr.f32.mxu0 0.0
      %753 = vmatmul.mubr.f32.gmra.mrb[0].mxu0 %v633
      %v754 = vpop.f32.mrb[0].mxu0
      %v755 = vadd.f32 %v617, %v754
      %v756 = vpop.f32.mrb[0].mxu0
      %757 = vmatprep.mubr.f32.mxu0 0.0
      %758 = vmatmul.mubr.f32.gmra.mrb[0].mxu0 %v636
      %v759 = vpop.f32.mrb[0].mxu0
      %v760 = vadd.f32 %v617, %v759
      %v761 = vpop.f32.mrb[0].mxu0
      %762 = vmatprep.mubr.f32.mxu0 0.0
      %763 = vmatmul.mubr.f32.gmra.mrb[0].mxu0 %v639
      %v764 = vpop.f32.mrb[0].mxu0
      %v765 = vadd.f32 %v617, %v764
      %v766 = vpop.f32.mrb[0].mxu0
      %767 = vmatprep.mubr.f32.mxu0 0.0
      %768 = vmatmul.mubr.f32.gmra.mrb[0].mxu0 %v642
      %v769 = vpop.f32.mrb[0].mxu0
      %v770 = vadd.f32 %v617, %v769
      %v771 = vpop.f32.mrb[0].mxu0
      %772 = vmatprep.mubr.f32.mxu0 0.0
      %773 = vmatmul.mubr.f32.gmra.mrb[0].mxu0 %v645
      %v774 = vpop.f32.mrb[0].mxu0
      %v775 = vadd.f32 %v617, %v774
      %v776 = vpop.f32.mrb[0].mxu0
      %777 = vmatprep.mubr.f32.mxu0 0.0
      %778 = vmatmul.mubr.f32.gmra.mrb[0].mxu0 %v648
      %v779 = vpop.f32.mrb[0].mxu0
      %v780 = vadd.f32 %v617, %v779
      %v781 = vpop.f32.mrb[0].mxu0
      %782 = vmatprep.mubr.f32.mxu0 0.0
      %783 = vmatmul.mubr.f32.gmra.mrb[0].mxu0 %v651
      %v784 = vpop.f32.mrb[0].mxu0
      %v785 = vadd.f32 %v617, %v784
      %v786 = vpop.f32.mrb[0].mxu0
      %787 = vmatprep.mubr.f32.mxu0 0.0
      %788 = vmatmul.mubr.f32.gmra.mrb[0].mxu0 %v654
      %v789 = vpop.f32.mrb[0].mxu0
      %v790 = vadd.f32 %v617, %v789
      %v791 = vpop.f32.mrb[0].mxu0
      %792 = vmatprep.mubr.f32.mxu0 0.0
      %793 = vmatmul.mubr.f32.gmra.mrb[0].mxu0 %v657
      %v794 = vpop.f32.mrb[0].mxu0
      %v795 = vadd.f32 %v617, %v794
      %v796 = vpop.f32.mrb[0].mxu0
      %797 = vmatprep.mubr.f32.mxu0 0.0
      %798 = vmatmul.mubr.f32.gmra.mrb[0].mxu0 %v660
      %v799 = vpop.f32.mrb[0].mxu0
      %v800 = vadd.f32 %v617, %v799
      %v801 = vpop.f32.mrb[0].mxu0
      %802 = vmatprep.mubr.f32.mxu0 0.0
      %803 = vmatmul.mubr.f32.gmra.mrb[0].mxu0 %v663
      %v804 = vpop.f32.mrb[0].mxu0
      %v805 = vadd.f32 %v617, %v804
      %v806 = vpop.f32.mrb[0].mxu0
      %807 = vmatprep.mubr.f32.mxu0 0.0
      %808 = vmatmul.mubr.f32.gmra.mrb[0].mxu0 %v666
      %v809 = vpop.f32.mrb[0].mxu0
      %v810 = vadd.f32 %v617, %v809
      %v811 = vpop.f32.mrb[0].mxu0
      %812 = vdwg.mxu0
      %vm813 = vcmp.ge.f32.partialorder %v735, 0.0
      %vm814 = vcmp.ge.f32.partialorder %v740, 0.0
      %vm815 = vcmp.ge.f32.partialorder %v745, 0.0
      %vm816 = vcmp.ge.f32.partialorder %v750, 0.0
      %vm817 = vcmp.ge.f32.partialorder %v755, 0.0
      %vm818 = vcmp.ge.f32.partialorder %v760, 0.0
      %vm819 = vcmp.ge.f32.partialorder %v765, 0.0
      %vm820 = vcmp.ge.f32.partialorder %v770, 0.0
      %vm821 = vcmp.ge.f32.partialorder %v775, 0.0
      %vm822 = vcmp.ge.f32.partialorder %v780, 0.0
      %vm823 = vcmp.ge.f32.partialorder %v785, 0.0
      %vm824 = vcmp.ge.f32.partialorder %v790, 0.0
      %vm825 = vcmp.ge.f32.partialorder %v795, 0.0
      %vm826 = vcmp.ge.f32.partialorder %v800, 0.0
      %vm827 = vcmp.ge.f32.partialorder %v805, 0.0
      %vm828 = vcmp.ge.f32.partialorder %v810, 0.0
      %v829 = vmul.f32 %v735, 0.01
      %v830 = vmul.f32 %v740, 0.01
      %v831 = vmul.f32 %v745, 0.01
      %v832 = vmul.f32 %v750, 0.01
      %v833 = vmul.f32 %v755, 0.01
      %v834 = vmul.f32 %v760, 0.01
      %v835 = vmul.f32 %v765, 0.01
      %v836 = vmul.f32 %v770, 0.01
      %v837 = vmul.f32 %v775, 0.01
      %v838 = vmul.f32 %v780, 0.01
      %v839 = vmul.f32 %v785, 0.01
      %v840 = vmul.f32 %v790, 0.01
      %v841 = vmul.f32 %v795, 0.01
      %v842 = vmul.f32 %v800, 0.01
      %v843 = vmul.f32 %v805, 0.01
      %v844 = vmul.f32 %v810, 0.01
      %v845 = vsel %vm813, %v735, %v829
      %v846 = vsel %vm814, %v740, %v830
      %v847 = vsel %vm815, %v745, %v831
      %v848 = vsel %vm816, %v750, %v832
      %v849 = vsel %vm817, %v755, %v833
      %v850 = vsel %vm818, %v760, %v834
      %v851 = vsel %vm819, %v765, %v835
      %v852 = vsel %vm820, %v770, %v836
      %v853 = vsel %vm821, %v775, %v837
      %v854 = vsel %vm822, %v780, %v838
      %v855 = vsel %vm823, %v785, %v839
      %v856 = vsel %vm824, %v790, %v840
      %v857 = vsel %vm825, %v795, %v841
      %v858 = vsel %vm826, %v800, %v842
      %v859 = vsel %vm827, %v805, %v843
      %v860 = vsel %vm828, %v810, %v844
      %vm861 = vcmask 261120
      %862 = vst.msk [vmem:[%s313] sm:$0xff] %vm861, %v845
      %863 = vst.msk [vmem:[%s313 + $0x8] sm:$0xff] %vm861, %v846
      %864 = vst.msk [vmem:[%s313 + $0x10] sm:$0xff] %vm861, %v847
      %865 = vst.msk [vmem:[%s313 + $0x18] sm:$0xff] %vm861, %v848
      %866 = vst.msk [vmem:[%s313 + $0x20] sm:$0xff] %vm861, %v849
      %867 = vst.msk [vmem:[%s313 + $0x28] sm:$0xff] %vm861, %v850
      %868 = vst.msk [vmem:[%s313 + $0x30] sm:$0xff] %vm861, %v851
      %869 = vst.msk [vmem:[%s313 + $0x38] sm:$0xff] %vm861, %v852
      %870 = vst.msk [vmem:[%s313 + $0x40] sm:$0xff] %vm861, %v853
      %871 = vst.msk [vmem:[%s313 + $0x48] sm:$0xff] %vm861, %v854
      %872 = vst.msk [vmem:[%s313 + $0x50] sm:$0xff] %vm861, %v855
      %873 = vst.msk [vmem:[%s313 + $0x58] sm:$0xff] %vm861, %v856
      %874 = vst.msk [vmem:[%s313 + $0x60] sm:$0xff] %vm861, %v857
      %875 = vst.msk [vmem:[%s313 + $0x68] sm:$0xff] %vm861, %v858
      %876 = vst.msk [vmem:[%s313 + $0x70] sm:$0xff] %vm861, %v859
      %877 = vst.msk [vmem:[%s313 + $0x78] sm:$0xff] %vm861, %v860
      %s878 = smul.u32 8, %s20
      %p879 = scmp.lt.s32.totalorder %s19, 1
      %s880 = scalar_select %p879, %s19, 1
      %p881 = scmp.lt.s32.totalorder %s878, 15
      %s882 = scalar_select %p881, %s878, 15
      %s883 = smul.addr %s882, 2
      %s884 = smul.addr %s880, 32
      %s885 = sadd.s32 %s883, %s884
      %s886 = smul.addr %s885, 8
      %s887 = scalar_lea.vmem %s4, %s886
      // Predicated region
      $region37: #{upsampling_forward.1} parent=35 // pred_check
        %p888 = pneg %p149
      $region38: #{upsampling_forward.1} parent=35 // pred_check_branch
        %890 = sbr.rel (%p888) target = $region40
      $region39: #{upsampling_forward.1} parent=35 // pred_region
        %s891 = smul.u32 8, %s20
      $region40: #{upsampling_forward.1} parent=35 // pred_fallthru
        _
    $region36: #{upsampling_forward.1} parent=5 // pred_fallthru
      _
    %p892 = scmp.le.s32.totalorder 2, %s10
    // Predicated region
    $region41: #{upsampling_forward.1} parent=5 // pred_check
      %p893 = pneg %p892
    $region42: #{upsampling_forward.1} parent=5 // pred_check_branch
      %895 = sbr.rel (%p893) target = $region44
    $region43: #{upsampling_forward.1} parent=5 // pred_region
      %s896 = ssub.s32 %s10, 2
      // Predicated region
      $region45: #{upsampling_forward.1} parent=43 // pred_check
        %p897 = pneg %p155
      $region46: #{upsampling_forward.1} parent=43 // pred_check_branch
        %899 = sbr.rel (%p897) target = $region48
      $region47: #{upsampling_forward.1} parent=43 // pred_region
        %s900 = smul.u32 8, %s22
        %p901 = scmp.lt.s32.totalorder %s21, 1
        %s902 = scalar_select %p901, %s21, 1
        %p903 = scmp.lt.s32.totalorder %s900, 15
        %s904 = scalar_select %p903, %s900, 15
        %s905 = smul.addr %s904, 2
        %s906 = smul.addr %s902, 32
        %s907 = sadd.s32 %s905, %s906
        %s908 = smul.addr %s907, 8
        %s909 = scalar_lea.vmem %s4, %s908
      $region48: #{upsampling_forward.1} parent=43 // pred_fallthru
        _
    $region44: #{upsampling_forward.1} parent=5 // pred_fallthru
      _
  $region6: #{upsampling_forward.1} parent=0 // loop_footer
    %s14 = sadd.s32 1, %s10
  $region7: #{upsampling_forward.1} parent=0 // loop_footer_branch
    %9 = sbr.rel target = $region3
  $region8: #{upsampling_forward.1} parent=0 // loop_exit
    _

</llo_original>
